<compile_context>
chip_gen: v6e
topology: v6e:2x2x1
jax: 0.10.0
libtpu: 0.0.40
codegen_flags: <defaults>
</compile_context>

<pallas_src>
import numpy as np
import jax
import jax.numpy as jnp
from jax.experimental import pallas as pl
from jax.experimental.pallas import tpu as pltpu


def _bilinear_matrix(in_size: int, out_size: int) -> np.ndarray:
    """1-D bilinear resampling matrix matching
    torch.nn.functional.interpolate(mode='bilinear', align_corners=False)
    along a single axis.  Shape: (out_size, in_size).  Static host-side glue."""
    M = np.zeros((out_size, in_size), dtype=np.float32)
    scale = in_size / out_size
    for d in range(out_size):
        src = scale * (d + 0.5) - 0.5
        if src < 0.0:
            src = 0.0
        i0 = min(int(np.floor(src)), in_size - 1)
        i1 = min(i0 + 1, in_size - 1)
        frac = src - float(i0)
        M[d, i0] += 1.0 - frac
        M[d, i1] += frac
    return M


def _pos_enc_kernel(params_ref, expand_ref, out_ref):
    # params_ref: (D, Hin+Win)   block-diagonal learned embeddings
    #             [[row2d, 0], [0, col2d]]
    # expand_ref: (Hin+Win, HW)  stacked fused (interp + spatial-expand) matrix
    # out_ref:    (D, HW)        lane-dense output (HW multiple of 128 here)
    out_ref[...] = jnp.dot(params_ref[...], expand_ref[...],
                           preferred_element_type=jnp.float32)


class PositionalEncoding2D:
    """JAX/Pallas port of the PyTorch module (deterministic synthetic params)."""

    def __init__(self, embed_dim, height, width, key):
        assert embed_dim % 2 == 0, "Embed dimension must be even"
        self.embed_dim = embed_dim
        self.height = height
        self.width = width
        d2 = embed_dim // 2

        k1, k2 = jax.random.split(key)
        # Same parameter shapes as the torch nn.Parameters.
        self.row_embed = jax.random.normal(
            k1, (1, d2, height, 1), dtype=jnp.float32)
        self.col_embed = jax.random.normal(
            k2, (1, d2, 1, width), dtype=jnp.float32)

        # Pre-squeezed 2-D views (once, not per call).
        self.row2d = self.row_embed.reshape(d2, height)   # (D2, Hin)
        self.col2d = self.col_embed.reshape(d2, width)    # (D2, Win)

        # Block-diagonal LHS built once:  (D, Hin+Win)
        #   rows [0:D2)   x cols [0:Hin)      = row2d
        #   rows [D2:D)   x cols [Hin:Hin+Win)= col2d
        params_bd = jnp.zeros((embed_dim, height + width), dtype=jnp.float32)
        params_bd = params_bd.at[:d2, :height].set(self.row2d)
        params_bd = params_bd.at[d2:, height:].set(self.col2d)
        self.params_bd = params_bd

        # Cache of stacked fused (interp + expand) matrices keyed on (H, W).
        self._mat_cache = {}

    def _fused_expansion_mat(self, H, W):
        key = (H, W)
        if key not in self._mat_cache:
            m_row = _bilinear_matrix(self.height, H)        # (H, Hin)
            m_col = _bilinear_matrix(self.width, W)         # (W, Win)
            # f_row[i, h*W + w] = m_row[h, i]  -> interp to H, repeat W times.
            f_row = np.repeat(m_row.T, W, axis=1)           # (Hin, H*W)
            # f_col[i, h*W + w] = m_col[w, i]  -> interp to W, tile H times.
            f_col = np.tile(m_col.T, (1, H))                # (Win, H*W)
            # Stacked RHS so the block-diag LHS needs only ONE matmul.
            f = np.concatenate([f_row, f_col], axis=0)      # (Hin+Win, H*W)
            # NOTE: for large H*W, cast to bf16 here to halve HBM read and use
            # the MXU's native bf16 path (loosen test tolerance accordingly).
            self._mat_cache[key] = jnp.asarray(f)
        return self._mat_cache[key]

    def __call__(self, x):
        B, _, H, W = x.shape          # x values are unused, only its shape
        D = self.embed_dim
        HW = H * W

        f = self._fused_expansion_mat(H, W)

        # Single-shot pallas_call: no grid, no pipelining machinery; both
        # inputs and the output are full-extent VMEM blocks (total resident
        # data is tens of KB -> VMEM is a non-issue on every generation).
        pos2d = pl.pallas_call(
            _pos_enc_kernel,
            out_shape=jax.ShapeDtypeStruct((D, HW), jnp.float32),
            in_specs=[
                pl.BlockSpec(memory_space=pltpu.MemorySpace.VMEM),
                pl.BlockSpec(memory_space=pltpu.MemorySpace.VMEM),
            ],
            out_specs=pl.BlockSpec(memory_space=pltpu.MemorySpace.VMEM),
        )(self.params_bd, f)

        # Batch replication == torch `.expand` (values are batch-invariant).
        # Kept outside the kernel; under jit with a consumer this broadcast
        # fuses away instead of writing B redundant HBM copies.
        return jnp.broadcast_to(pos2d.reshape(1, D, H, W), (B, D, H, W))


if __name__ == "__main__":
    key = jax.random.PRNGKey(0)
    kx, kp = jax.random.split(key)

    # Module built for (height=12, width=10) feature maps; the forward
    # bilinearly resamples its embeddings to the actual input size (16, 16).
    module = PositionalEncoding2D(embed_dim=32, height=12, width=10, key=kp)
    x = jax.random.normal(kx, (2, 4, 16, 16), dtype=jnp.float32)

    pos = module(x)
    pos = jax.block_until_ready(pos)

    assert pos.shape == (2, 32, 16, 16), pos.shape
    assert pos.dtype == jnp.float32
    assert bool(jnp.all(jnp.isfinite(pos)))

    # Pure-JAX reference (same math as the torch module).
    B, _, H, W = x.shape
    D2 = module.embed_dim // 2
    m_row = jnp.asarray(_bilinear_matrix(module.height, H))   # (H, Hin)
    m_col = jnp.asarray(_bilinear_matrix(module.width, W))    # (W, Win)
    row_vals = module.row2d @ m_row.T                          # (D2, H)
    col_vals = module.col2d @ m_col.T                          # (D2, W)
    ref = jnp.concatenate(
        [jnp.broadcast_to(row_vals[:, :, None], (D2, H, W)),
         jnp.broadcast_to(col_vals[:, None, :], (D2, H, W))], axis=0)
    ref = jnp.broadcast_to(ref[None], (B, 2 * D2, H, W))
    assert bool(jnp.allclose(pos, ref, atol=1e-5, rtol=1e-5))

    print("KERNEL_OK")
</pallas_src>

<mosaic_0001>
module attributes {stable_mosaic.version = 11 : i64} {
  func.func @_pos_enc_kernel(%arg0: memref<32x22xf32, #tpu.memory_space<vmem>>, %arg1: memref<22x256xf32, #tpu.memory_space<vmem>>, %arg2: memref<32x256xf32, #tpu.memory_space<vmem>>) attributes {dimension_semantics = [], scalar_prefetch = 0 : i64, scratch_operands = 0 : i64, tpu.core_type = #tpu.core_type<tc>} {
    %c0 = arith.constant 0 : index
    %c0_0 = arith.constant 0 : index
    %0 = vector.load %arg0[%c0, %c0_0] : memref<32x22xf32, #tpu.memory_space<vmem>>, vector<32x22xf32>
    %c0_1 = arith.constant 0 : index
    %c0_2 = arith.constant 0 : index
    %1 = vector.load %arg1[%c0_1, %c0_2] : memref<22x256xf32, #tpu.memory_space<vmem>>, vector<22x256xf32>
    %cst = arith.constant dense<0.000000e+00> : vector<32x256xf32>
    %2 = tpu.matmul %0, %1, %cst {dimension_numbers = #tpu.dot_dimension_numbers<[1], [0], [0], [1], [0, 0, 1, 1], [], []>} : vector<32x22xf32>, vector<22x256xf32>, vector<32x256xf32> -> vector<32x256xf32>
    %c0_3 = arith.constant 0 : index
    %c0_4 = arith.constant 0 : index
    %3 = vector.load %arg2[%c0_3, %c0_4] : memref<32x256xf32, #tpu.memory_space<vmem>>, vector<32x256xf32>
    tpu.vector_store %arg2[%c0_3, %c0_4], %2 {strides = array<i32>} : memref<32x256xf32, #tpu.memory_space<vmem>>, vector<32x256xf32>,
    return
  }
}

</mosaic_0001>

<llo_original>
// kernel: tpu_custom_call.1
$region0: #{tpu_custom_call.1}
  #allocation0 [shape = 'u32[]', space=smem, size = 0x4, offset = 0x4, fixed_abs, tag = 'smem constant byte address 0x4 - core index']
  #allocation1 [shape = 'u32[144,128]{1,0:T(1,128)}', space=vmem, size = 0x12000, scoped, tag = 'internal scratch']
  %s0 = inlined_call_operand.vmem [shape: f32[32,22], index: 0, kind: input, shape index: {}]
  %s1 = inlined_call_operand.vmem [shape: f32[22,256], index: 1, kind: input, shape index: {}]
  %s2 = inlined_call_operand.hbm [shape: f32[32,256], index: 2, kind: output, shape index: {}]
  %s3 = sld [smem:[#allocation0]]
  $region18: #{tpu_custom_call.1} parent=0
    _
  %s5 = ssub.s32 1, %s3
  %s6 = scalar_select 0, %s5, %s3
  $region1: #{tpu_custom_call.1} parent=0
    #allocation2 [shape = 'u8[32768]{0}', space=vmem, size = 0x8000, scoped, tag = 'output window, operand 0, single buffered']
    #allocation3 [shape = 's32[1]{0}', space=sflag, size = 0x4, scoped, tag = 'scoped memory for tpu_custom_call.1']
    %7 = vsyncpa [#allocation3], 0
    // Predicated region
    $region2: #{tpu_custom_call.1} parent=1 // pred_check
      _
    $region3: #{tpu_custom_call.1} parent=1 // pred_check_branch
      %9 = sbr.rel (0) target = $region5
    $region4: #{tpu_custom_call.1} parent=1 // pred_region
      _
    $region5: #{tpu_custom_call.1} parent=1 // pred_fallthru
      _
    // Predicated region
    $region6: #{tpu_custom_call.1} parent=1 // pred_check
      _
    $region7: #{tpu_custom_call.1} parent=1 // pred_check_branch
      %11 = sbr.rel (0) target = $region9
    $region8: #{tpu_custom_call.1} parent=1 // pred_region
      _
    $region9: #{tpu_custom_call.1} parent=1 // pred_fallthru
      _
    %v12 = vld [vmem:[%s0] sm:$0xff]
    %v13 = vld [vmem:[%s0 + $0x8] sm:$0xff]
    %v14 = vld [vmem:[%s0 + $0x10] sm:$0xff]
    %v15 = vld [vmem:[%s0 + $0x18] sm:$0xff]
    %v16 = vld [vmem:[%s1] sm:$0xff]
    %v17 = vld [vmem:[%s1 + $0x8] sm:$0xff]
    %v18 = vld [vmem:[%s1 + $0x10] sm:$0xff]
    %v19 = vld [vmem:[%s1 + $0x18] sm:$0xff]
    %v20 = vld [vmem:[%s1 + $0x20] sm:$0x3f]
    %v21 = vld [vmem:[%s1 + $0x28] sm:$0x3f]
    %vm22 = vcmask 179200
    %v24 = vsel %vm22, %v12, 0
    %v27 = vsel %vm22, %v13, 0
    %v30 = vsel %vm22, %v14, 0
    %v33 = vsel %vm22, %v15, 0
    %vm35 = vcmask 1045504
    %v37 = vsel %vm35, %v20, 0
    %v40 = vsel %vm35, %v21, 0
    %42 = vmatprep.subr.mxu0 0.0
    %43 = vmatpush1.msra.mxu0 0.0
    %44 = vmatprep.subr.mxu0 0.0
    %45 = vmatpush1.msra.mxu0 0.0
    %46 = vmatprep.subr.mxu0 0.0
    %47 = vmatpush1.msra.mxu0 0.0
    %48 = vmatprep.subr.mxu0 0.0
    %49 = vmatpush1.msra.mxu0 0.0
    %50 = vmatprep.subr.mxu0 0.0
    %51 = vmatpush1.msra.mxu0 0.0
    %52 = vmatprep.subr.mxu0 0.0
    %53 = vmatpush1.msra.mxu0 0.0
    %54 = vmatprep.subr.mxu0 0.0
    %55 = vmatpush1.msra.mxu0 0.0
    %56 = vmatprep.subr.mxu0 0.0
    %57 = vmatpush1.msra.mxu0 0.0
    %58 = vmatprep.subr.mxu0 0.0
    %59 = vmatpush1.msra.mxu0 0.0
    %60 = vmatprep.subr.mxu0 0.0
    %61 = vmatpush1.msra.mxu0 0.0
    %62 = vmatprep.subr.mxu0 0.0
    %63 = vmatpush1.msra.mxu0 0.0
    %64 = vmatprep.subr.mxu0 0.0
    %65 = vmatpush1.msra.mxu0 0.0
    %66 = vmatprep.subr.mxu0 0.0
    %67 = vmatpush1.msra.mxu0 0.0
    %68 = vmatprep.subr.mxu0 %v40
    %69 = vmatpush1.msra.mxu0 %v37
    %70 = vmatprep.subr.mxu0 %v19
    %71 = vmatpush1.msra.mxu0 %v18
    %72 = vmatprep.subr.mxu0 %v17
    %73 = vmatpush1.msra.mxu0 %v16
    %74 = vmatprep.subr.mxu0 0.0
    %75 = vmatpush2.msra.mxu0 0.0
    %76 = vmatprep.subr.mxu0 0.0
    %77 = vmatpush2.msra.mxu0 0.0
    %78 = vmatprep.subr.mxu0 0.0
    %79 = vmatpush2.msra.mxu0 0.0
    %80 = vmatprep.subr.mxu0 0.0
    %81 = vmatpush2.msra.mxu0 0.0
    %82 = vmatprep.subr.mxu0 0.0
    %83 = vmatpush2.msra.mxu0 0.0
    %84 = vmatprep.subr.mxu0 0.0
    %85 = vmatpush2.msra.mxu0 0.0
    %86 = vmatprep.subr.mxu0 0.0
    %87 = vmatpush2.msra.mxu0 0.0
    %88 = vmatprep.subr.mxu0 0.0
    %89 = vmatpush2.msra.mxu0 0.0
    %90 = vmatprep.subr.mxu0 0.0
    %91 = vmatpush2.msra.mxu0 0.0
    %92 = vmatprep.subr.mxu0 0.0
    %93 = vmatpush2.msra.mxu0 0.0
    %94 = vmatprep.subr.mxu0 0.0
    %95 = vmatpush2.msra.mxu0 0.0
    %96 = vmatprep.subr.mxu0 0.0
    %97 = vmatpush2.msra.mxu0 0.0
    %98 = vmatprep.subr.mxu0 0.0
    %99 = vmatpush2.msra.mxu0 0.0
    %100 = vmatprep.subr.mxu0 0.0
    %101 = vmatpush2.msra.mxu0 0.0
    %102 = vmatprep.subr.mxu0 0.0
    %103 = vmatpush2.msra.mxu0 0.0
    %104 = vmatprep.subr.mxu0 0.0
    %105 = vmatpush2.msra.mxu0 0.0
    %106 = vmatprep.mubr.f32.mxu0 0.0
    %107 = vmatmul.mubr.f32.gmra.mxu0 %v24
    %v108 = vpop.f32.mrf.mxu0
    %v109 = vadd.f32 0.0, %v108
    %v110 = vpop.f32.mrf.mxu0
    %v111 = vadd.f32 0.0, %v110
    %112 = vmatprep.mubr.f32.mxu0 0.0
    %113 = vmatmul.mubr.f32.gmra.mxu0 %v27
    %v114 = vpop.f32.mrf.mxu0
    %v115 = vadd.f32 0.0, %v114
    %v116 = vpop.f32.mrf.mxu0
    %v117 = vadd.f32 0.0, %v116
    %118 = vmatprep.mubr.f32.mxu0 0.0
    %119 = vmatmul.mubr.f32.gmra.mxu0 %v30
    %v120 = vpop.f32.mrf.mxu0
    %v121 = vadd.f32 0.0, %v120
    %v122 = vpop.f32.mrf.mxu0
    %v123 = vadd.f32 0.0, %v122
    %124 = vmatprep.mubr.f32.mxu0 0.0
    %125 = vmatmul.mubr.f32.gmra.mxu0 %v33
    %v126 = vpop.f32.mrf.mxu0
    %v127 = vadd.f32 0.0, %v126
    %v128 = vpop.f32.mrf.mxu0
    %v129 = vadd.f32 0.0, %v128
    %130 = vdwg.mxu0
    %131 = vst [vmem:[#allocation2] sm:$0xff] %v109
    %132 = vst [vmem:[#allocation2 + $0x8] sm:$0xff] %v111
    %133 = vst [vmem:[#allocation2 + $0x10] sm:$0xff] %v115
    %134 = vst [vmem:[#allocation2 + $0x18] sm:$0xff] %v117
    %135 = vst [vmem:[#allocation2 + $0x20] sm:$0xff] %v121
    %136 = vst [vmem:[#allocation2 + $0x28] sm:$0xff] %v123
    %137 = vst [vmem:[#allocation2 + $0x30] sm:$0xff] %v127
    %138 = vst [vmem:[#allocation2 + $0x38] sm:$0xff] %v129
    // Predicated region
    $region10: #{tpu_custom_call.1} parent=1 // pred_check
      _
    $region11: #{tpu_custom_call.1} parent=1 // pred_check_branch
      %140 = sbr.rel (0) target = $region13
    $region12: #{tpu_custom_call.1} parent=1 // pred_region
      %s142 = ssub.s32 1024, 1024
      %143 = vsyncadd [#allocation3], %s142
      %s144 = sshll.u32 [#allocation2], 4
      %s145 = int_to_ptr.vmem [resolvable:$true] %s144
      %150 = dma.vmem_to_hbm [thread:$0]  %s145, 1024, %s2, [#allocation3], 256, 256, 16
    $region13: #{tpu_custom_call.1} parent=1 // pred_fallthru
      _
    // Predicated region
    $region14: #{tpu_custom_call.1} parent=1 // pred_check
      _
    $region15: #{tpu_custom_call.1} parent=1 // pred_check_branch
      %152 = sbr.rel (0) target = $region17
    $region16: #{tpu_custom_call.1} parent=1 // pred_region
      %153 = dma.done [#allocation3], 1024
    $region17: #{tpu_custom_call.1} parent=1 // pred_fallthru
      _
    %154 = vsyncpa [#allocation3], 1

</llo_original>
